<compile_context>
chip_gen: v7x
topology: tpu7x:2x2x1
jax: 0.10.0
libtpu: 0.0.40
codegen_flags: <defaults>
</compile_context>

<pallas_src>
import jax
import jax.numpy as jnp
from jax.experimental import pallas as pl
from jax.experimental.pallas import tpu as pltpu  # noqa: F401  (TPU backend namespace)


def _noop_alias_kernel(x_hbm_ref, o_hbm_ref):
    # Output is buffer-aliased to the input (input_output_aliases={0: 0}),
    # so the identity requires no loads, stores, or DMA at all.
    del x_hbm_ref, o_hbm_ref


def dummy_transformer_block(x):
    """Pallas implementation of DummyTransformerBlock.forward (identity).

    x: [B, S, E] array. Returns an array with identical shape/dtype/values.

    Note: the output aliases the input buffer.  If the caller does NOT donate
    x, XLA inserts one defensive HBM->HBM copy before the custom call; use
    `dummy_transformer_block_donated` (and do not reuse x afterwards) for the
    genuinely DMA-free path.
    """
    return pl.pallas_call(
        _noop_alias_kernel,
        out_shape=jax.ShapeDtypeStruct(x.shape, x.dtype),
        in_specs=[pl.BlockSpec(memory_space=pl.ANY)],
        out_specs=pl.BlockSpec(memory_space=pl.ANY),
        input_output_aliases={0: 0},
        cost_estimate=pl.CostEstimate(flops=0, transcendentals=0, bytes_accessed=0),
    )(x)


# Truly zero-copy entry point: the input buffer is donated, so the aliased
# output reuses it in place and no HBM traffic is generated at all.
dummy_transformer_block_donated = jax.jit(dummy_transformer_block, donate_argnums=0)


if __name__ == "__main__":
    key = jax.random.PRNGKey(0)
    # Shapes consistent with the module's example usage: torch.rand(2, 3, 768)
    x = jax.random.uniform(key, (2, 3, 768), dtype=jnp.float32)

    # Non-donating path (x stays live so we can compare against it).
    y = dummy_transformer_block(x)
    y = jax.block_until_ready(y)
    assert y.shape == x.shape and y.dtype == x.dtype
    assert bool(jnp.all(y == x))

    # Donating (genuinely zero-copy) path: donate a private copy, compare to y.
    x_donate = jnp.array(x)  # private buffer we are allowed to give up
    z = dummy_transformer_block_donated(x_donate)
    z = jax.block_until_ready(z)
    assert z.shape == y.shape and z.dtype == y.dtype
    assert bool(jnp.all(z == y))

    print("KERNEL_OK")
</pallas_src>

<mosaic_0001>
module attributes {stable_mosaic.version = 11 : i64} {
  func.func @_noop_alias_kernel(%arg0: memref<2x3x768xf32, #tpu.memory_space<any>>, %arg1: memref<2x3x768xf32, #tpu.memory_space<any>>) attributes {dimension_semantics = [], scalar_prefetch = 0 : i64, scratch_operands = 0 : i64, tpu.core_type = #tpu.core_type<tc>} {
    return
  }
}

</mosaic_0001>

<llo_original>
// kernel: tpu_custom_call.1
$region0: #{tpu_custom_call.1}
  #allocation0 [shape = 'u32[]', space=smem, size = 0x4, offset = 0x4, fixed_abs, tag = 'smem constant byte address 0x4 - core index']
  #allocation1 [shape = 'u32[144,128]{1,0:T(1,128)}', space=vmem, size = 0x12000, scoped, tag = 'internal scratch']
  %s0 = inlined_call_operand.vmem [shape: f32[2,3,768], index: 0, kind: input, shape index: {}, may-alias: {0,1}]
  %s1 = inlined_call_operand.vmem [shape: f32[2,3,768], index: 1, kind: output, shape index: {}, may-alias: {0,1}]
  %s2 = sld [smem:[#allocation0]]
  $region2: #{tpu_custom_call.1} parent=0
    _
  %s4 = ssub.s32 1, %s2
  %s5 = scalar_select 0, %s4, %s2

</llo_original>
